<compile_context>
chip_gen: v7x
topology: tpu7x:2x2x1
jax: 0.10.0
libtpu: 0.0.40
codegen_flags: <defaults>
</compile_context>

<pallas_src>
import functools

import jax
import jax.numpy as jnp
from jax.experimental import pallas as pl
from jax.experimental.pallas import tpu as pltpu


def _residual_ln_linear_kernel(x_ref, a_ref, b_ref, w_ref, wb_ref, o_ref, *, eps):
    # x_ref: (TR, H)   a_ref/b_ref/wb_ref: (1, H)   w_ref: (H, H)
    x = x_ref[...].astype(jnp.float32)
    h = x.shape[-1]

    # Custom LayerNorm: unbiased (N-1) variance, eps added to std.
    mean = jnp.mean(x, axis=-1, keepdims=True)
    diff = x - mean
    var_unbiased = jnp.sum(diff * diff, axis=-1, keepdims=True) * (1.0 / (h - 1))
    std = jnp.sqrt(var_unbiased)
    inv = pl.reciprocal(std + eps, approx=True)          # EUP, off the VALU path
    scale = a_ref[...].astype(jnp.float32) * inv          # fold a_2 into the scale
    normed = diff * scale + b_ref[...].astype(jnp.float32)

    # Sublayer Linear(H -> H): MXU matmul in the weight's dtype (bf16
    # recommended), accumulating in f32.
    y = jnp.dot(
        normed.astype(w_ref.dtype), w_ref[...], preferred_element_type=jnp.float32
    )

    # Dropout (eval) is identity; fused bias + residual add epilogue.
    o_ref[...] = (x + (y + wb_ref[...].astype(jnp.float32))).astype(o_ref.dtype)


def _pick_block_rows(rows, hidden, x_itemsize, w_itemsize, max_block_rows=512):
    """Row-tile size: multiple of 8, budgeted for v7x's 64 MiB VMEM."""
    budget = 40 * 1024 * 1024  # block working set target (limit set to 48 MiB)
    # Resident weight + params (counted twice, conservatively, for buffering).
    resident = 2 * (hidden * hidden * w_itemsize + 3 * hidden * 4)
    per_row = 4 * hidden * x_itemsize  # 2 x-buffers + 2 out-buffers per row
    avail = max(budget - resident, per_row * 8)
    tr = min(max_block_rows, avail // per_row)
    if tr >= rows:
        return rows
    return max(8, (int(tr) // 8) * 8)


def residual_skip_connection_with_layer_norm(x, a_2, b_2, w, w_bias, *, eps=1e-6):
    """x: [B, S, H]; a_2/b_2/w_bias: [H]; w: [H, H] (applied as normed @ w + w_bias)."""
    B, S, H = x.shape
    rows = B * S
    x2 = x.reshape(rows, H)

    tr = _pick_block_rows(
        rows, H, jnp.dtype(x.dtype).itemsize, jnp.dtype(w.dtype).itemsize
    )
    grid = (pl.cdiv(rows, tr),)

    kernel = functools.partial(_residual_ln_linear_kernel, eps=eps)

    out2 = pl.pallas_call(
        kernel,
        out_shape=jax.ShapeDtypeStruct((rows, H), x.dtype),
        grid_spec=pl.GridSpec(
            grid=grid,
            in_specs=[
                pl.BlockSpec((tr, H), lambda i: (i, 0)),   # x  (streamed, pipelined)
                pl.BlockSpec((1, H), lambda i: (0, 0)),    # a_2   (resident)
                pl.BlockSpec((1, H), lambda i: (0, 0)),    # b_2   (resident)
                pl.BlockSpec((H, H), lambda i: (0, 0)),    # w     (resident)
                pl.BlockSpec((1, H), lambda i: (0, 0)),    # w_bias (resident)
            ],
            out_specs=pl.BlockSpec((tr, H), lambda i: (i, 0)),
        ),
        compiler_params=pltpu.CompilerParams(
            dimension_semantics=("parallel",),        # row tiles are independent
            vmem_limit_bytes=48 * 1024 * 1024,        # fits v7x's 64 MiB w/ headroom
        ),
    )(x2, a_2.reshape(1, H), b_2.reshape(1, H), w, w_bias.reshape(1, H))

    return out2.reshape(B, S, H)


def _reference(x, a_2, b_2, w, w_bias, eps=1e-6):
    xf = x.astype(jnp.float32)
    mean = jnp.mean(xf, axis=-1, keepdims=True)
    diff = xf - mean
    var = jnp.sum(diff * diff, axis=-1, keepdims=True) / (x.shape[-1] - 1)
    std = jnp.sqrt(var)
    normed = a_2 * diff / (std + eps) + b_2
    y = (
        jnp.dot(normed.astype(w.dtype), w, preferred_element_type=jnp.float32)
        + w_bias
    )
    return (xf + y).astype(x.dtype)


if __name__ == "__main__":
    B, S, H = 2, 8, 32
    key = jax.random.PRNGKey(0)
    kx, kw, kb = jax.random.split(key, 3)

    x = jax.random.normal(kx, (B, S, H), dtype=jnp.float32)

    # LayerNorm params as in __init__: ones / zeros
    a_2 = jnp.ones((H,), dtype=jnp.float32)
    b_2 = jnp.zeros((H,), dtype=jnp.float32)

    # Deterministic synthetic sublayer (Linear H->H); weight kept in bf16 so
    # the MXU runs native bf16 (f32 accumulation inside the kernel).
    w = (jax.random.normal(kw, (H, H), dtype=jnp.float32) / jnp.sqrt(H)).astype(
        jnp.bfloat16
    )
    w_bias = jax.random.normal(kb, (H,), dtype=jnp.float32) * 0.01

    out = residual_skip_connection_with_layer_norm(x, a_2, b_2, w, w_bias)
    out = jax.block_until_ready(out)

    ref = _reference(x, a_2, b_2, w, w_bias)
    assert out.shape == (B, S, H)
    max_err = float(jnp.max(jnp.abs(out - ref)))
    assert jnp.allclose(out, ref, atol=2e-2, rtol=2e-2), f"mismatch vs reference: {max_err}"

    print("KERNEL_OK")
</pallas_src>

<mosaic_0001>
module attributes {stable_mosaic.version = 11 : i64} {
  func.func @_residual_ln_linear_kernel(%arg0: i32, %arg1: memref<16x32xf32, #tpu.memory_space<vmem>>, %arg2: memref<1x32xf32, #tpu.memory_space<vmem>>, %arg3: memref<1x32xf32, #tpu.memory_space<vmem>>, %arg4: memref<32x32xbf16, #tpu.memory_space<vmem>>, %arg5: memref<1x32xf32, #tpu.memory_space<vmem>>, %arg6: memref<16x32xf32, #tpu.memory_space<vmem>>) attributes {dimension_semantics = [#tpu.dimension_semantics<parallel>], iteration_bounds = array<i64: 1>, scalar_prefetch = 0 : i64, scratch_operands = 0 : i64, tpu.core_type = #tpu.core_type<tc>, window_params = [{transform_indices = @transform_0, window_bounds = array<i64: 16, 32>}, {pipeline_mode = #tpu.pipeline_mode<synchronous>, transform_indices = @transform_1, window_bounds = array<i64: 1, 32>}, {pipeline_mode = #tpu.pipeline_mode<synchronous>, transform_indices = @transform_2, window_bounds = array<i64: 1, 32>}, {pipeline_mode = #tpu.pipeline_mode<synchronous>, transform_indices = @transform_3, window_bounds = array<i64: 32, 32>}, {pipeline_mode = #tpu.pipeline_mode<synchronous>, transform_indices = @transform_4, window_bounds = array<i64: 1, 32>}, {transform_indices = @transform_5, window_bounds = array<i64: 16, 32>}]} {
    %c0 = arith.constant 0 : index
    %c0_0 = arith.constant 0 : index
    %0 = vector.load %arg1[%c0, %c0_0] : memref<16x32xf32, #tpu.memory_space<vmem>>, vector<16x32xf32>
    %cst = arith.constant dense<0.000000e+00> : vector<16xf32>
    %1 = vector.multi_reduction <add>, %0, %cst [1] : vector<16x32xf32> to vector<16xf32>
    %2 = vector.shape_cast %1 : vector<16xf32> to vector<16x1xf32>
    %cst_1 = arith.constant 3.200000e+01 : f32
    %3 = vector.broadcast %cst_1 : f32 to vector<16x1xf32>
    %4 = arith.divf %2, %3 : vector<16x1xf32>
    %5 = vector.broadcast %4 : vector<16x1xf32> to vector<16x32xf32>
    %6 = arith.subf %0, %5 : vector<16x32xf32>
    %7 = arith.mulf %6, %6 : vector<16x32xf32>
    %cst_2 = arith.constant dense<0.000000e+00> : vector<16xf32>
    %8 = vector.multi_reduction <add>, %7, %cst_2 [1] : vector<16x32xf32> to vector<16xf32>
    %9 = vector.shape_cast %8 : vector<16xf32> to vector<16x1xf32>
    %cst_3 = arith.constant 0.0322580636 : f32
    %10 = vector.broadcast %cst_3 : f32 to vector<16x1xf32>
    %11 = arith.mulf %9, %10 : vector<16x1xf32>
    %12 = math.sqrt %11 : vector<16x1xf32>
    %cst_4 = arith.constant 9.99999997E-7 : f32
    %13 = vector.broadcast %cst_4 : f32 to vector<16x1xf32>
    %14 = arith.addf %12, %13 : vector<16x1xf32>
    %15 = tpu.reciprocal %14 {approx = true} : vector<16x1xf32> -> vector<16x1xf32>
    %c0_5 = arith.constant 0 : index
    %c0_6 = arith.constant 0 : index
    %16 = vector.load %arg2[%c0_5, %c0_6] : memref<1x32xf32, #tpu.memory_space<vmem>>, vector<1x32xf32>
    %17 = vector.broadcast %16 : vector<1x32xf32> to vector<16x32xf32>
    %18 = vector.broadcast %15 : vector<16x1xf32> to vector<16x32xf32>
    %19 = arith.mulf %17, %18 : vector<16x32xf32>
    %20 = arith.mulf %6, %19 : vector<16x32xf32>
    %c0_7 = arith.constant 0 : index
    %c0_8 = arith.constant 0 : index
    %21 = vector.load %arg3[%c0_7, %c0_8] : memref<1x32xf32, #tpu.memory_space<vmem>>, vector<1x32xf32>
    %22 = vector.broadcast %21 : vector<1x32xf32> to vector<16x32xf32>
    %23 = arith.addf %20, %22 : vector<16x32xf32>
    %24 = arith.truncf %23 : vector<16x32xf32> to vector<16x32xbf16>
    %c0_9 = arith.constant 0 : index
    %c0_10 = arith.constant 0 : index
    %25 = vector.load %arg4[%c0_9, %c0_10] : memref<32x32xbf16, #tpu.memory_space<vmem>>, vector<32x32xbf16>
    %cst_11 = arith.constant dense<0.000000e+00> : vector<16x32xf32>
    %26 = tpu.matmul %24, %25, %cst_11 {dimension_numbers = #tpu.dot_dimension_numbers<[1], [0], [0], [1], [0, 0, 1, 1], [], []>} : vector<16x32xbf16>, vector<32x32xbf16>, vector<16x32xf32> -> vector<16x32xf32>
    %c0_12 = arith.constant 0 : index
    %c0_13 = arith.constant 0 : index
    %27 = vector.load %arg5[%c0_12, %c0_13] : memref<1x32xf32, #tpu.memory_space<vmem>>, vector<1x32xf32>
    %28 = vector.broadcast %27 : vector<1x32xf32> to vector<16x32xf32>
    %29 = arith.addf %26, %28 : vector<16x32xf32>
    %30 = arith.addf %0, %29 : vector<16x32xf32>
    %c0_14 = arith.constant 0 : index
    %c0_15 = arith.constant 0 : index
    %31 = vector.load %arg6[%c0_14, %c0_15] : memref<16x32xf32, #tpu.memory_space<vmem>>, vector<16x32xf32>
    tpu.vector_store %arg6[%c0_14, %c0_15], %30 {strides = array<i32>} : memref<16x32xf32, #tpu.memory_space<vmem>>, vector<16x32xf32>,
    return
  }
  func.func @transform_0(%arg0: i32) -> (i32, i32) {
    %c0_i32 = arith.constant 0 : i32
    %c0_i32_0 = arith.constant 0 : i32
    return %arg0, %c0_i32 : i32, i32
  }
  func.func @transform_1(%arg0: i32) -> (i32, i32) {
    %c0_i32 = arith.constant 0 : i32
    %c0_i32_0 = arith.constant 0 : i32
    %c0_i32_1 = arith.constant 0 : i32
    return %c0_i32, %c0_i32_0 : i32, i32
  }
  func.func @transform_2(%arg0: i32) -> (i32, i32) {
    %c0_i32 = arith.constant 0 : i32
    %c0_i32_0 = arith.constant 0 : i32
    %c0_i32_1 = arith.constant 0 : i32
    return %c0_i32, %c0_i32_0 : i32, i32
  }
  func.func @transform_3(%arg0: i32) -> (i32, i32) {
    %c0_i32 = arith.constant 0 : i32
    %c0_i32_0 = arith.constant 0 : i32
    %c0_i32_1 = arith.constant 0 : i32
    return %c0_i32, %c0_i32_0 : i32, i32
  }
  func.func @transform_4(%arg0: i32) -> (i32, i32) {
    %c0_i32 = arith.constant 0 : i32
    %c0_i32_0 = arith.constant 0 : i32
    %c0_i32_1 = arith.constant 0 : i32
    return %c0_i32, %c0_i32_0 : i32, i32
  }
  func.func @transform_5(%arg0: i32) -> (i32, i32) {
    %c0_i32 = arith.constant 0 : i32
    %c0_i32_0 = arith.constant 0 : i32
    return %arg0, %c0_i32 : i32, i32
  }
}

</mosaic_0001>

<llo_original>
// kernel: tpu_custom_call.1
$region0: #{tpu_custom_call.1}
  #allocation0 [shape = 'u32[]', space=smem, size = 0x4, offset = 0x4, fixed_abs, tag = 'smem constant byte address 0x4 - core index']
  #allocation1 [shape = 'u32[144,128]{1,0:T(1,128)}', space=vmem, size = 0x12000, scoped, tag = 'internal scratch']
  %s0 = inlined_call_operand.hbm [shape: f32[16,32], index: 0, kind: input, shape index: {}]
  %s1 = inlined_call_operand.vmem [shape: f32[1,32], index: 1, kind: input, shape index: {}]
  %s2 = inlined_call_operand.vmem [shape: f32[1,32], index: 2, kind: input, shape index: {}]
  %s3 = inlined_call_operand.hbm [shape: bf16[32,32], index: 3, kind: input, shape index: {}]
  %s4 = inlined_call_operand.vmem [shape: f32[1,32], index: 4, kind: input, shape index: {}]
  %s5 = inlined_call_operand.hbm [shape: f32[16,32], index: 5, kind: output, shape index: {}]
  %s6 = sld [smem:[#allocation0]]
  $region38: #{tpu_custom_call.1} parent=0
    _
  %s8 = ssub.s32 1, %s6
  %s9 = scalar_select 0, %s8, %s6
  $region1: #{tpu_custom_call.1} parent=0
    #allocation2 [shape = 'u8[8192]{0}', space=vmem, size = 0x2000, scoped, tag = 'input window, operand 0, single buffered']
    #allocation3 [shape = 's32[1]{0}', space=sflag, size = 0x4, scoped, tag = 'scoped memory for tpu_custom_call.1']
    #allocation4 [shape = 's32[1]{0}', space=sflag, size = 0x4, scoped, tag = 'scoped memory for tpu_custom_call.1']
    #allocation5 [shape = 'u8[8192]{0}', space=vmem, size = 0x2000, scoped, tag = 'input window, operand 3, single buffered']
    #allocation6 [shape = 's32[1]{0}', space=sflag, size = 0x4, scoped, tag = 'scoped memory for tpu_custom_call.1']
    #allocation7 [shape = 'u8[8192]{0}', space=vmem, size = 0x2000, scoped, tag = 'output window, operand 0, single buffered']
    %10 = vsyncpa [#allocation3], 0
    %11 = vsyncpa [#allocation6], 0
    %12 = vsyncpa [#allocation4], 0
    // Predicated region
    $region2: #{tpu_custom_call.1} parent=1 // pred_check
      _
    $region3: #{tpu_custom_call.1} parent=1 // pred_check_branch
      %14 = sbr.rel (0) target = $region5
    $region4: #{tpu_custom_call.1} parent=1 // pred_region
      %s16 = ssub.s32 256, 256
      %17 = vsyncadd [#allocation3], %s16
      %s18 = sshll.u32 [#allocation2], 4
      %s19 = int_to_ptr.vmem [resolvable:$true] %s18
      %24 = dma.hbm_to_vmem [thread:$0]  %s0, 256, %s19, [#allocation3], 128, 128, 8
    $region5: #{tpu_custom_call.1} parent=1 // pred_fallthru
      _
    // Predicated region
    $region6: #{tpu_custom_call.1} parent=1 // pred_check
      _
    $region7: #{tpu_custom_call.1} parent=1 // pred_check_branch
      %26 = sbr.rel (0) target = $region9
    $region8: #{tpu_custom_call.1} parent=1 // pred_region
      _
    $region9: #{tpu_custom_call.1} parent=1 // pred_fallthru
      _
    // Predicated region
    $region10: #{tpu_custom_call.1} parent=1 // pred_check
      _
    $region11: #{tpu_custom_call.1} parent=1 // pred_check_branch
      %28 = sbr.rel (0) target = $region13
    $region12: #{tpu_custom_call.1} parent=1 // pred_region
      _
    $region13: #{tpu_custom_call.1} parent=1 // pred_fallthru
      _
    // Predicated region
    $region14: #{tpu_custom_call.1} parent=1 // pred_check
      _
    $region15: #{tpu_custom_call.1} parent=1 // pred_check_branch
      %30 = sbr.rel (0) target = $region17
    $region16: #{tpu_custom_call.1} parent=1 // pred_region
      %s32 = ssub.s32 256, 256
      %33 = vsyncadd [#allocation6], %s32
      %s34 = sshll.u32 [#allocation5], 4
      %s35 = int_to_ptr.vmem [resolvable:$true] %s34
      %40 = dma.hbm_to_vmem [thread:$0]  %s3, 256, %s35, [#allocation6], 64, 64, 4
    $region17: #{tpu_custom_call.1} parent=1 // pred_fallthru
      _
    // Predicated region
    $region18: #{tpu_custom_call.1} parent=1 // pred_check
      _
    $region19: #{tpu_custom_call.1} parent=1 // pred_check_branch
      %42 = sbr.rel (0) target = $region21
    $region20: #{tpu_custom_call.1} parent=1 // pred_region
      _
    $region21: #{tpu_custom_call.1} parent=1 // pred_fallthru
      _
    // Predicated region
    $region22: #{tpu_custom_call.1} parent=1 // pred_check
      _
    $region23: #{tpu_custom_call.1} parent=1 // pred_check_branch
      %44 = sbr.rel (0) target = $region25
    $region24: #{tpu_custom_call.1} parent=1 // pred_region
      %45 = dma.done [#allocation3], 256
    $region25: #{tpu_custom_call.1} parent=1 // pred_fallthru
      _
    // Predicated region
    $region26: #{tpu_custom_call.1} parent=1 // pred_check
      _
    $region27: #{tpu_custom_call.1} parent=1 // pred_check_branch
      %47 = sbr.rel (0) target = $region29
    $region28: #{tpu_custom_call.1} parent=1 // pred_region
      %48 = dma.done [#allocation6], 256
    $region29: #{tpu_custom_call.1} parent=1 // pred_fallthru
      _
    %v50 = vld [vmem:[#allocation2] sm:$0xff]
    %v51 = vld [vmem:[#allocation2 + $0x8] sm:$0xff]
    %vm52 = vcmask 261120
    %v53 = vsel %vm52, %v50, 0.0
    %54 = vadd.xlane.f32.xlu0 %v53
    %v55 = vpop.xlane.xlu0 %54
    %v56 = vsel %vm52, %v51, 0.0
    %57 = vadd.xlane.f32.xlu0 %v56
    %v58 = vpop.xlane.xlu0 %57
    %v59 = vrcp.pop 32.0
    %v60 = vmul.f32 %v55, %v59
    %v61 = vmul.f32 %v58, %v59
    %v62 = vsub.f32 %v50, %v60
    %v63 = vsub.f32 %v51, %v61
    %v64 = vmul.f32 %v62, %v62
    %v65 = vmul.f32 %v63, %v63
    %v66 = vsel %vm52, %v64, 0.0
    %67 = vadd.xlane.f32.xlu0 %v66
    %v68 = vpop.xlane.xlu0 %67
    %v69 = vsel %vm52, %v65, 0.0
    %70 = vadd.xlane.f32.xlu0 %v69
    %v71 = vpop.xlane.xlu0 %70
    %v72 = vmul.f32 %v68, 0.032258064
    %v73 = vmul.f32 %v71, 0.032258064
    %v74 = vrsqrt.pop %v72
    %v75 = vmul.f32 %v72, %v74
    %vm76 = vcmp.eq.f32.partialorder %v72, inf
    %v77 = vsel %vm76, %v72, %v75
    %vm78 = vcmp.eq.f32.partialorder %v72, 0.0
    %v79 = vand.u32 %v72, 2147483648
    %v80 = vsel %vm78, %v79, %v77
    %v81 = vrsqrt.pop %v73
    %v82 = vmul.f32 %v73, %v81
    %vm83 = vcmp.eq.f32.partialorder %v73, inf
    %v84 = vsel %vm83, %v73, %v82
    %vm85 = vcmp.eq.f32.partialorder %v73, 0.0
    %v86 = vand.u32 %v73, 2147483648
    %v87 = vsel %vm85, %v86, %v84
    %v88 = vadd.f32 %v80, 1e-06
    %v89 = vadd.f32 %v87, 1e-06
    %v90 = vrcp.pop %v88
    %v91 = vrcp.pop %v89
    %v92 = vld [vmem:[%s1] sm:$0x1]
    %v94 = vlaneseq
    %v95 = vshrl.u32 %v94, 7
    %v96 = vsub.s32 0, %v95
    %v97 = vrot.slane %v92, %v96
    %v99 = vmul.f32 %v97, %v90
    %v100 = vmul.f32 %v97, %v91
    %v101 = vmul.f32 %v62, %v99
    %v102 = vmul.f32 %v63, %v100
    %v103 = vld [vmem:[%s2] sm:$0x1]
    %v105 = vlaneseq
    %v106 = vshrl.u32 %v105, 7
    %v107 = vsub.s32 0, %v106
    %v108 = vrot.slane %v103, %v107
    %v110 = vadd.f32 %v101, %v108
    %v111 = vadd.f32 %v102, %v108
    %v112 = vpack.c.bf16 %v111, %v110
    %v113 = vld [vmem:[#allocation5] sm:$0xf]
    %v114 = vld [vmem:[#allocation5 + $0x4] sm:$0xf]
    %v115 = vld [vmem:[#allocation5 + $0x8] sm:$0xf]
    %v116 = vld [vmem:[#allocation5 + $0xc] sm:$0xf]
    %v117 = vld [vmem:[%s4] sm:$0x1]
    %v119 = vlaneseq
    %v120 = vshrl.u32 %v119, 7
    %v121 = vsub.s32 0, %v120
    %v122 = vrot.slane %v117, %v121
    %v128 = vunpack.c.l.b16 %v113
    %v129 = vunpack.c.l.b16 %v114
    %v130 = vunpack.c.l.b16 %v115
    %v131 = vunpack.c.l.b16 %v116
    %v132 = vpack.c.b16 %v129, %v128
    %v133 = vpack.c.b16 %v131, %v130
    %v137 = vsel %vm52, %v112, 0
    %139 = vmatprep.subr.bf16.mxu0 0
    %140 = vmatpush1.bf16.msra.mxu0 %v132
    %141 = vmatprep.subr.bf16.mxu0 0
    %142 = vmatpush1.bf16.msra.mxu0 %v133
    %143 = vmatprep.subr.bf16.mxu0 0
    %144 = vmatpush1.bf16.msra.mxu0 0
    %145 = vmatprep.subr.bf16.mxu0 0
    %146 = vmatpush1.bf16.msra.mxu0 0
    %147 = vmatprep.subr.bf16.mxu0 0
    %148 = vmatpush1.bf16.msra.mxu0 0
    %149 = vmatprep.subr.bf16.mxu0 0
    %150 = vmatpush1.bf16.msra.mxu0 0
    %151 = vmatprep.subr.bf16.mxu0 0
    %152 = vmatpush1.bf16.msra.mxu0 0
    %153 = vmatprep.subr.bf16.mxu0 0
    %154 = vmatpush1.bf16.msra.mxu0 0
    %155 = vmatprep.subr.bf16.mxu0 0
    %156 = vmatpush1.bf16.msra.mxu0 0
    %157 = vmatprep.subr.bf16.mxu0 0
    %158 = vmatpush1.bf16.msra.mxu0 0
    %159 = vmatprep.subr.bf16.mxu0 0
    %160 = vmatpush1.bf16.msra.mxu0 0
    %161 = vmatprep.subr.bf16.mxu0 0
    %162 = vmatpush1.bf16.msra.mxu0 0
    %163 = vmatprep.subr.bf16.mxu0 0
    %164 = vmatpush1.bf16.msra.mxu0 0
    %165 = vmatprep.subr.bf16.mxu0 0
    %166 = vmatpush1.bf16.msra.mxu0 0
    %167 = vmatprep.subr.bf16.mxu0 0
    %168 = vmatpush1.bf16.msra.mxu0 0
    %169 = vmatprep.subr.bf16.mxu0 0
    %170 = vmatpush1.bf16.msra.mxu0 0
    %171 = vmatprep.mubr.bf16.mxu0 0
    %172 = vmatmul.mubr.bf16.gmra.mrb[0].mxu0 %v137
    %v173 = vpop.f32.mrb[0].mxu0
    %v174 = vadd.f32 %v122, %v173
    %v175 = vpop.f32.mrb[0].mxu0
    %v176 = vpop.f32.mrb[0].mxu0
    %v177 = vadd.f32 %v122, %v176
    %v178 = vpop.f32.mrb[0].mxu0
    %179 = vdwg.mxu0
    %v180 = vadd.f32 %v50, %v174
    %v181 = vadd.f32 %v51, %v177
    %182 = vst.msk [vmem:[#allocation7] sm:$0xff] %vm52, %v180
    %183 = vst.msk [vmem:[#allocation7 + $0x8] sm:$0xff] %vm52, %v181
    // Predicated region
    $region30: #{tpu_custom_call.1} parent=1 // pred_check
      _
    $region31: #{tpu_custom_call.1} parent=1 // pred_check_branch
      %185 = sbr.rel (0) target = $region33
    $region32: #{tpu_custom_call.1} parent=1 // pred_region
      %s187 = ssub.s32 256, 256
      %188 = vsyncadd [#allocation4], %s187
      %s189 = sshll.u32 [#allocation7], 4
      %s190 = int_to_ptr.vmem [resolvable:$true] %s189
      %195 = dma.vmem_to_hbm [thread:$0]  %s190, 256, %s5, [#allocation4], 128, 128, 8
    $region33: #{tpu_custom_call.1} parent=1 // pred_fallthru
      _
    // Predicated region
    $region34: #{tpu_custom_call.1} parent=1 // pred_check
      _
    $region35: #{tpu_custom_call.1} parent=1 // pred_check_branch
      %197 = sbr.rel (0) target = $region37
    $region36: #{tpu_custom_call.1} parent=1 // pred_region
      %198 = dma.done [#allocation4], 256
    $region37: #{tpu_custom_call.1} parent=1 // pred_fallthru
      _
    %199 = vsyncpa [#allocation3], 1
    %200 = vsyncpa [#allocation6], 1
    %201 = vsyncpa [#allocation4], 1

</llo_original>
